<compile_context>
chip_gen: v7x
topology: tpu7x:2x2x1
jax: 0.10.0
libtpu: 0.0.40
codegen_flags: <defaults>
</compile_context>

<pallas_src>
import functools
from typing import Optional

import numpy as np
import jax
import jax.numpy as jnp
from jax.experimental import pallas as pl
from jax.experimental.pallas import tpu as pltpu


_FAST_PATH_MAX_F = 32  # <= this many selected columns -> slice/concat path


def _round_up(x: int, m: int) -> int:
    return ((x + m - 1) // m) * m


def _choose_tile_b(B: int, bytes_per_row: int, resident_bytes: int) -> int:
    """Batch tile: big enough to amortize the ~0.35us/step overhead, small
    enough for a conservative VMEM budget, and >= 2 grid steps (v7x: 2 TCs)."""
    budget = 16 << 20                      # safe on v5e/v6e/v7x scoped defaults
    by_vmem = max(8, ((budget - resident_bytes) // max(bytes_per_row, 1)) // 8 * 8)
    tile_b = min(1024, by_vmem)
    if B >= 16:
        # keep at least 2 grid steps so "parallel" can shard across both v7x TCs
        tile_b = min(tile_b, max(8, _round_up(pl.cdiv(B, 2), 8)))
    if tile_b >= B:
        return B                            # one full-extent block (exempt from 8-div rule)
    return max(tile_b, 8)


def _vmem_limit(tile_b: int, bytes_per_row: int, resident_bytes: int) -> int:
    need = tile_b * bytes_per_row + resident_bytes + (4 << 20)   # headroom
    return int(min(max(need, 16 << 20), 48 << 20))


# ----------------------------------------------------------------------------
# General path: one-hot matmul on the MXU (exact gather).
# ----------------------------------------------------------------------------
def _matmul_gather_kernel(x_ref, s_ref, o_ref):
    x = x_ref[...]
    s = s_ref[...]
    if x.dtype == jnp.float32:
        # HIGHEST keeps the f32 x operand exact on the MXU (multi bf16 passes,
        # f32 accumulation); the one-hot selector then gives a bit-exact gather.
        acc = jnp.dot(x, s.astype(jnp.float32),
                      preferred_element_type=jnp.float32,
                      precision=jax.lax.Precision.HIGHEST)
    else:
        acc = jnp.dot(x, s.astype(x.dtype), preferred_element_type=jnp.float32)
    o_ref[...] = acc.astype(o_ref.dtype)


@jax.jit
def _sparse_select_matmul(x2d: jax.Array, selector: jax.Array) -> jax.Array:
    """x2d: (B, D); selector: (D, F) one-hot bf16 (pre-transposed, features on
    the lane axis). Returns (B, F) with no padding and no post-slices."""
    B, D = x2d.shape
    Ds, F = selector.shape
    assert Ds == D
    itemsize = x2d.dtype.itemsize
    sel_bytes = selector.size * selector.dtype.itemsize
    bytes_per_row = 2 * (D + F) * itemsize        # double-buffered x tile + out tile
    tile_b = _choose_tile_b(B, bytes_per_row, 2 * sel_bytes)

    cost = pl.CostEstimate(
        flops=2 * B * D * F, transcendentals=0,
        bytes_accessed=B * D * itemsize + sel_bytes + B * F * itemsize)

    return pl.pallas_call(
        _matmul_gather_kernel,
        out_shape=jax.ShapeDtypeStruct((B, F), x2d.dtype),
        grid=(pl.cdiv(B, tile_b),),                # ragged last tile is fine
        in_specs=[
            pl.BlockSpec((tile_b, D), lambda i: (i, 0)),
            # constant index_map -> fetched once, resident across the grid
            pl.BlockSpec((D, F), lambda i: (0, 0)),
        ],
        out_specs=pl.BlockSpec((tile_b, F), lambda i: (i, 0)),
        compiler_params=pltpu.CompilerParams(
            dimension_semantics=("parallel",),
            vmem_limit_bytes=_vmem_limit(tile_b, bytes_per_row, 2 * sel_bytes)),
        cost_estimate=cost,
    )(x2d, selector)


# ----------------------------------------------------------------------------
# Fast path for small F: static lane slices + concat (no MXU, no selector).
# ----------------------------------------------------------------------------
def _make_slice_gather_kernel(idx):
    def kernel(x_ref, o_ref):
        x = x_ref[...]
        cols = [x[:, d:d + 1] for d in idx]       # static single-lane slices
        o_ref[...] = cols[0] if len(cols) == 1 else jnp.concatenate(cols, axis=1)
    return kernel


@functools.partial(jax.jit, static_argnames=("idx",))
def _sparse_select_small(x2d: jax.Array, idx) -> jax.Array:
    B, D = x2d.shape
    F = len(idx)
    itemsize = x2d.dtype.itemsize
    bytes_per_row = 2 * (D + F) * itemsize
    tile_b = _choose_tile_b(B, bytes_per_row, 0)

    cost = pl.CostEstimate(
        flops=0, transcendentals=0,
        bytes_accessed=B * (D + F) * itemsize)

    return pl.pallas_call(
        _make_slice_gather_kernel(idx),
        out_shape=jax.ShapeDtypeStruct((B, F), x2d.dtype),
        grid=(pl.cdiv(B, tile_b),),
        in_specs=[pl.BlockSpec((tile_b, D), lambda i: (i, 0))],
        out_specs=pl.BlockSpec((tile_b, F), lambda i: (i, 0)),
        compiler_params=pltpu.CompilerParams(
            dimension_semantics=("parallel",),
            vmem_limit_bytes=_vmem_limit(tile_b, bytes_per_row, 0)),
        cost_estimate=cost,
    )(x2d)


# ----------------------------------------------------------------------------
# SparsePrecomputedFeatures (JAX glue around the Pallas kernels)
# ----------------------------------------------------------------------------
class SparsePrecomputedFeaturesJAX:
    """JAX/Pallas port of SparsePrecomputedFeatures: forward(x) = x[..., sparse_index]."""

    def __init__(self, num_features: int,
                 input_labels: Optional[np.ndarray] = None) -> None:
        self._num_features = int(num_features)
        if input_labels is None:
            self._feature_names = np.array(
                ["x_{}".format(i) for i in range(self._num_features)])
        else:
            assert len(input_labels) == num_features, \
                "Number of labels should be the same as number of inputs."
            self._feature_names = np.asarray(input_labels)
        self.sparse_index = np.arange(self._num_features, dtype=np.int64)
        self._refresh()

    def _refresh(self) -> None:
        idx = np.asarray(self.sparse_index, dtype=np.int64).reshape(-1)
        F = int(idx.size)
        self._num_selected = F
        self._is_identity = bool(
            F == self._num_features
            and np.array_equal(idx, np.arange(self._num_features)))
        self._use_fast_path = (not self._is_identity) and F <= _FAST_PATH_MAX_F
        self._idx_tuple = tuple(int(i) for i in idx)
        if self._is_identity or self._use_fast_path:
            self._selector = None
        else:
            # Pre-transposed one-hot selector (D on sublane/K axis, selected
            # features on the lane/N axis); 0/1 are exact in bf16.
            s = np.zeros((self._num_features, F), dtype=np.float32)
            s[idx, np.arange(F)] = 1.0
            self._selector = jnp.asarray(s, dtype=jnp.bfloat16)

    # --- SparseFeaturesLibrary API ------------------------------------------
    def update_basis(self, sparse_index) -> None:
        idx = np.asarray(sparse_index, dtype=np.int64).reshape(-1)
        assert idx.size > 0, "sparse_index must be non-empty."
        # Fixed off-by-one: indices must be strictly less than num_features.
        assert int(idx.max()) < self._num_features, \
            "More sparsity inducing indices than features."
        assert int(idx.min()) >= -self._num_features, "Index out of range."
        idx = np.where(idx < 0, idx + self._num_features, idx)
        self.sparse_index = idx
        self._refresh()

    def forward(self, x: jax.Array) -> jax.Array:
        lead = x.shape[:-1]
        D = x.shape[-1]
        assert D == self._num_features, "Last dim of x must equal num_features."
        if self._is_identity:
            return x                                   # no-op short circuit
        x2d = x.reshape((-1, D))
        if self._use_fast_path:
            out = _sparse_select_small(x2d, self._idx_tuple)
        else:
            out = _sparse_select_matmul(x2d, self._selector)
        return out.reshape(lead + (self._num_selected,))

    __call__ = forward

    def __str__(self) -> str:
        return " + ".join(
            np.asarray(self._feature_names)[np.asarray(self.sparse_index)].tolist())

    @property
    def feature_names(self):
        return self._feature_names

    @property
    def num_features(self) -> int:
        return self._num_features


# ----------------------------------------------------------------------------
if __name__ == "__main__":
    key = jax.random.PRNGKey(0)
    k1, k2 = jax.random.split(key)

    # Case 1: small D/F -> fast (no-MXU) slice/concat path. Bit-exact check.
    D1 = 16
    x1 = jax.random.normal(k1, (2, 8, D1), dtype=jnp.float32)
    lib1 = SparsePrecomputedFeaturesJAX(num_features=D1)
    lib1.update_basis(np.array([0, 2, 5, 7, 9, 11, 13, 15]))
    out1 = jax.block_until_ready(lib1(x1))
    ref1 = x1[..., lib1.sparse_index]
    assert out1.shape == ref1.shape == (2, 8, 8)
    assert bool(jnp.all(out1 == ref1)), "fast-path gather not bit-exact"

    # Case 2: larger D/F -> one-hot MXU path (bf16 selector). B=200 is not a
    # multiple of the batch tile (ragged last tile) and F=136 is not a multiple
    # of 128 (masked tail stores, no padded columns). Bit-exact checks.
    D2, F2 = 192, 136
    x2 = jax.random.normal(k2, (5, 40, D2), dtype=jnp.float32)
    rng = np.random.RandomState(0)
    idx2 = rng.permutation(D2)[:F2]
    lib2 = SparsePrecomputedFeaturesJAX(num_features=D2)
    lib2.update_basis(idx2)
    out2 = jax.block_until_ready(lib2(x2))
    ref2 = x2[..., lib2.sparse_index]
    assert out2.shape == ref2.shape == (5, 40, F2)
    assert bool(jnp.all(out2 == ref2)), "matmul-path gather not bit-exact (f32)"

    # Same library on bf16 input (exercises the default-precision branch).
    x2b = x2.astype(jnp.bfloat16)
    out2b = jax.block_until_ready(lib2(x2b))
    ref2b = x2b[..., lib2.sparse_index]
    assert bool(jnp.all(out2b == ref2b)), "matmul-path gather not bit-exact (bf16)"

    # Identity sparse_index short-circuits to a no-op (no kernel, no copy).
    lib3 = SparsePrecomputedFeaturesJAX(num_features=D1)
    assert lib3(x1) is x1

    print("KERNEL_OK")
</pallas_src>

<mosaic_0001>
module attributes {stable_mosaic.version = 11 : i64} {
  func.func @kernel(%arg0: i32, %arg1: memref<8x16xf32, #tpu.memory_space<vmem>>, %arg2: memref<8x8xf32, #tpu.memory_space<vmem>>) attributes {dimension_semantics = [#tpu.dimension_semantics<parallel>], iteration_bounds = array<i64: 2>, scalar_prefetch = 0 : i64, scratch_operands = 0 : i64, tpu.core_type = #tpu.core_type<tc>, window_params = [{transform_indices = @transform_0, window_bounds = array<i64: 8, 16>}, {transform_indices = @transform_1, window_bounds = array<i64: 8, 8>}]} {
    %c0 = arith.constant 0 : index
    %c0_0 = arith.constant 0 : index
    %0 = vector.load %arg1[%c0, %c0_0] : memref<8x16xf32, #tpu.memory_space<vmem>>, vector<8x16xf32>
    %1 = vector.extract_strided_slice %0 {offsets = [0, 0], sizes = [8, 1], strides = [1, 1]} : vector<8x16xf32> to vector<8x1xf32>
    %2 = vector.extract_strided_slice %0 {offsets = [0, 2], sizes = [8, 1], strides = [1, 1]} : vector<8x16xf32> to vector<8x1xf32>
    %3 = vector.extract_strided_slice %0 {offsets = [0, 5], sizes = [8, 1], strides = [1, 1]} : vector<8x16xf32> to vector<8x1xf32>
    %4 = vector.extract_strided_slice %0 {offsets = [0, 7], sizes = [8, 1], strides = [1, 1]} : vector<8x16xf32> to vector<8x1xf32>
    %5 = vector.extract_strided_slice %0 {offsets = [0, 9], sizes = [8, 1], strides = [1, 1]} : vector<8x16xf32> to vector<8x1xf32>
    %6 = vector.extract_strided_slice %0 {offsets = [0, 11], sizes = [8, 1], strides = [1, 1]} : vector<8x16xf32> to vector<8x1xf32>
    %7 = vector.extract_strided_slice %0 {offsets = [0, 13], sizes = [8, 1], strides = [1, 1]} : vector<8x16xf32> to vector<8x1xf32>
    %8 = vector.extract_strided_slice %0 {offsets = [0, 15], sizes = [8, 1], strides = [1, 1]} : vector<8x16xf32> to vector<8x1xf32>
    %9 = tpu.concatenate %1, %2, %3, %4, %5, %6, %7, %8 in 1 : vector<8x1xf32>, vector<8x1xf32>, vector<8x1xf32>, vector<8x1xf32>, vector<8x1xf32>, vector<8x1xf32>, vector<8x1xf32>, vector<8x1xf32> -> vector<8x8xf32>
    %c0_1 = arith.constant 0 : index
    %c0_2 = arith.constant 0 : index
    %10 = vector.load %arg2[%c0_1, %c0_2] : memref<8x8xf32, #tpu.memory_space<vmem>>, vector<8x8xf32>
    tpu.vector_store %arg2[%c0_1, %c0_2], %9 {strides = array<i32>} : memref<8x8xf32, #tpu.memory_space<vmem>>, vector<8x8xf32>,
    return
  }
  func.func @transform_0(%arg0: i32) -> (i32, i32) {
    %c0_i32 = arith.constant 0 : i32
    %c0_i32_0 = arith.constant 0 : i32
    return %arg0, %c0_i32 : i32, i32
  }
  func.func @transform_1(%arg0: i32) -> (i32, i32) {
    %c0_i32 = arith.constant 0 : i32
    %c0_i32_0 = arith.constant 0 : i32
    return %arg0, %c0_i32 : i32, i32
  }
}

</mosaic_0001>

<llo_original>
// kernel: _sparse_select_small.1
$region0: #{_sparse_select_small.1}
  #allocation0 [shape = 'u32[]', space=smem, size = 0x4, offset = 0x4, fixed_abs, tag = 'smem constant byte address 0x4 - core index']
  #allocation1 [shape = 'u32[144,128]{1,0:T(1,128)}', space=vmem, size = 0x12000, scoped, tag = 'internal scratch']
  %s0 = inlined_call_operand.hbm [shape: f32[16,16], index: 0, kind: input, shape index: {}]
  %s1 = inlined_call_operand.vmem [shape: f32[16,8], index: 1, kind: output, shape index: {}]
  %s2 = sld [smem:[#allocation0]]
  $region41: #{_sparse_select_small.1} parent=0
    _
  %s4 = ssub.s32 1, %s2
  %s5 = scalar_select 0, %s4, %s2
  $region1: #{_sparse_select_small.1} parent=0
    #allocation2 [shape = 'u8[8192]{0}', space=vmem, size = 0x2000, scoped, tag = 'input window, operand 0']
    #allocation3 [shape = 's32[2]{0}', space=sflag, size = 0x8, scoped, tag = 'scoped memory for _sparse_select_small.1']
    %6 = vsyncpa [#allocation3], 0
    %s7 = scalar_lea.sflag [#allocation3], 1
    %8 = vsyncpa %s7, 0
    loop: start=0, step=1, limit=4
    $region2: #{_sparse_select_small.1} parent=1 // loop_pre_header
      _
    $region3: #{_sparse_select_small.1} parent=1 // loop_header
      %s10 = sphi 0, %s14
      %p11 = scmp.ge.s32.totalorder %s10, 4
      %s20 = sphi 0, %s22
      %s23 = sphi 0, %s20
      %s24 = sphi 0, %s23
      %s40 = sphi 0, %s24
      %s46 = sphi 0, %s48
      %s49 = sphi 0, %s46
      %s50 = sphi 0, %s49
      %s66 = sphi 0, %s50
    $region4: #{_sparse_select_small.1} parent=1 // loop_header_branch
      %13 = sbr.rel (%p11) target = $region8
    $region5: #{_sparse_select_small.1} parent=1 // loop_body
      %s15 = ssub.s32 %s10, 1
      %s16 = ssub.s32 %s10, 2
      %s17 = sadd.s32 %s10, 1
      %s18 = ssub.s32 %s10, %s17
      %p19 = scmp.eq.s32.totalorder %s18, 0
      %s21 = sadd.s32 %s20, 1
      %s22 = scalar_select %p19, %s20, %s21
      %p25 = pneg %p19
      %p26 = scmp.eq.s32.totalorder %s10, 1
      %p27 = por %p25, %p26
      %p28 = scmp.ne.s32.totalorder %s20, %s23
      %p29 = scmp.eq.s32.totalorder %s10, 0
      %p30 = por %p28, %p29
      %p31 = scmp.ne.s32.totalorder %s20, %s23
      %p32 = scmp.eq.s32.totalorder %s15, 1
      %p33 = por %p31, %p32
      %p34 = scmp.ne.s32.totalorder %s23, %s24
      %p35 = scmp.eq.s32.totalorder %s15, 0
      %p36 = por %p34, %p35
      %p37 = scmp.ne.s32.totalorder %s23, %s24
      %p38 = scmp.eq.s32.totalorder %s16, 1
      %p39 = por %p37, %p38
      %p41 = scmp.ne.s32.totalorder %s24, %s40
      %p42 = scmp.eq.s32.totalorder %s16, 0
      %p43 = por %p41, %p42
      %s44 = ssub.s32 %s10, %s17
      %p45 = scmp.eq.s32.totalorder %s44, 0
      %s47 = sadd.s32 %s46, 1
      %s48 = scalar_select %p45, %s46, %s47
      %p51 = pneg %p45
      %p52 = scmp.eq.s32.totalorder %s10, 1
      %p53 = por %p51, %p52
      %p54 = scmp.ne.s32.totalorder %s46, %s49
      %p55 = scmp.eq.s32.totalorder %s10, 0
      %p56 = por %p54, %p55
      %p57 = scmp.ne.s32.totalorder %s46, %s49
      %p58 = scmp.eq.s32.totalorder %s15, 1
      %p59 = por %p57, %p58
      %p60 = scmp.ne.s32.totalorder %s49, %s50
      %p61 = scmp.eq.s32.totalorder %s15, 0
      %p62 = por %p60, %p61
      %p63 = scmp.ne.s32.totalorder %s49, %s50
      %p64 = scmp.eq.s32.totalorder %s16, 1
      %p65 = por %p63, %p64
      %p67 = scmp.ne.s32.totalorder %s50, %s66
      %p68 = scmp.eq.s32.totalorder %s16, 0
      %p69 = por %p67, %p68
      %p70 = scmp.le.s32.totalorder 1, %s10
      %p71 = scmp.lt.s32.totalorder %s10, 3
      %p72 = pnand %p70, %p71
      %p73 = pneg %p72
      // Predicated region
      $region9: #{_sparse_select_small.1} parent=5 // pred_check
        _
      $region10: #{_sparse_select_small.1} parent=5 // pred_check_branch
        %75 = sbr.rel (%p72) target = $region12
      $region11: #{_sparse_select_small.1} parent=5 // pred_region
        %s76 = ssub.s32 %s10, 1
      $region12: #{_sparse_select_small.1} parent=5 // pred_fallthru
        _
      %p77 = scmp.lt.s32.totalorder %s10, 2
      // Predicated region
      $region13: #{_sparse_select_small.1} parent=5 // pred_check
        %p78 = pneg %p77
      $region14: #{_sparse_select_small.1} parent=5 // pred_check_branch
        %80 = sbr.rel (%p78) target = $region16
      $region15: #{_sparse_select_small.1} parent=5 // pred_region
        // Predicated region
        $region17: #{_sparse_select_small.1} parent=15 // pred_check
          %p81 = pneg %p30
        $region18: #{_sparse_select_small.1} parent=15 // pred_check_branch
          %83 = sbr.rel (%p81) target = $region20
        $region19: #{_sparse_select_small.1} parent=15 // pred_region
          %s84 = sand.u32 %s20, 1
          %s85 = scalar_lea.sflag [#allocation3], %s84
          %s86 = sand.u32 %s20, 1
          %s87 = smul.addr %s86, 8
          %s88 = scalar_lea.vmem [#allocation2], %s87
          %s90 = ssub.s32 128, 128
          %91 = vsyncadd %s85, %s90
          %s92 = smul.addr %s10, 128
          %s93 = scalar_lea.hbm %s0, %s92
          %s95 = sshll.u32 %s88, 4
          %s96 = int_to_ptr.vmem [resolvable:$true] %s95
          %98 = dma.hbm_to_vmem [thread:$0]  %s93, 128, %s96, %s85
        $region20: #{_sparse_select_small.1} parent=15 // pred_fallthru
          _
      $region16: #{_sparse_select_small.1} parent=5 // pred_fallthru
        _
      %p99 = scmp.le.s32.totalorder 1, %s10
      %p100 = scmp.lt.s32.totalorder %s10, 3
      %p101 = pnand %p99, %p100
      %p102 = pneg %p101
      // Predicated region
      $region21: #{_sparse_select_small.1} parent=5 // pred_check
        _
      $region22: #{_sparse_select_small.1} parent=5 // pred_check_branch
        %104 = sbr.rel (%p101) target = $region24
      $region23: #{_sparse_select_small.1} parent=5 // pred_region
        %s105 = ssub.s32 %s10, 1
        %s106 = sand.u32 %s23, 1
        %s107 = scalar_lea.sflag [#allocation3], %s106
        %s108 = sand.u32 %s23, 1
        %s109 = smul.addr %s108, 8
        %s110 = scalar_lea.vmem [#allocation2], %s109
        // Predicated region
        $region25: #{_sparse_select_small.1} parent=23 // pred_check
          %p111 = pneg %p36
        $region26: #{_sparse_select_small.1} parent=23 // pred_check_branch
          %113 = sbr.rel (%p111) target = $region28
        $region27: #{_sparse_select_small.1} parent=23 // pred_region
          %114 = dma.done %s107, 128
        $region28: #{_sparse_select_small.1} parent=23 // pred_fallthru
          _
        %s115 = sand.u32 %s23, 1
        %s116 = scalar_lea.sflag [#allocation3], %s115
        %s117 = sand.u32 %s23, 1
        %s118 = smul.addr %s117, 8
        %s119 = scalar_lea.vmem [#allocation2], %s118
        %p120 = pneg %p36
        %p121 = pneg %p33
        %p122 = pneg %p62
        %p123 = pneg %p59
        %p124 = scmp.lt.s32.totalorder %s15, 1
        %s125 = scalar_select %p124, %s15, 1
        %s126 = smul.addr %s125, 8
        %s127 = scalar_lea.vmem %s1, %s126
        %p128 = scmp.lt.s32.totalorder %s15, 1
        %s129 = scalar_select %p128, %s15, 1
        %s130 = smul.addr %s129, 8
        %s131 = scalar_lea.vmem %s1, %s130
        %v132 = vld [vmem:[%s110] sm:$0xff]
        %134 = vrot.lane.b32.xlu0 %v132, 127
        %v135 = vpop.permute.xlu0 %134
        %137 = vrot.lane.b32.xlu0 %v132, 125
        %v138 = vpop.permute.xlu0 %137
        %140 = vrot.lane.b32.xlu0 %v132, 124
        %v141 = vpop.permute.xlu0 %140
        %143 = vrot.lane.b32.xlu0 %v132, 123
        %v144 = vpop.permute.xlu0 %143
        %146 = vrot.lane.b32.xlu0 %v132, 122
        %v147 = vpop.permute.xlu0 %146
        %149 = vrot.lane.b32.xlu0 %v132, 121
        %v150 = vpop.permute.xlu0 %149
        %152 = vrot.lane.b32.xlu0 %v132, 120
        %v153 = vpop.permute.xlu0 %152
        %vm155 = vcmask 7168
        %v156 = vsel %vm155, %v132, %v135
        %vm157 = vcmask 15360
        %v158 = vsel %vm157, %v156, %v138
        %vm159 = vcmask 23552
        %v160 = vsel %vm159, %v158, %v141
        %vm161 = vcmask 31744
        %v162 = vsel %vm161, %v160, %v144
        %vm163 = vcmask 39936
        %v164 = vsel %vm163, %v162, %v147
        %vm165 = vcmask 48128
        %v166 = vsel %vm165, %v164, %v150
        %vm167 = vcmask 56320
        %v168 = vsel %vm167, %v166, %v153
        %vm169 = vcmask 64512
        %170 = vst.msk [vmem:[%s131] sm:$0xff] %vm169, %v168
        %p171 = scmp.lt.s32.totalorder %s15, 1
        %s172 = scalar_select %p171, %s15, 1
        %s173 = smul.addr %s172, 8
        %s174 = scalar_lea.vmem %s1, %s173
        // Predicated region
        $region29: #{_sparse_select_small.1} parent=23 // pred_check
          %p175 = pneg %p59
        $region30: #{_sparse_select_small.1} parent=23 // pred_check_branch
          %177 = sbr.rel (%p175) target = $region32
        $region31: #{_sparse_select_small.1} parent=23 // pred_region
          _
        $region32: #{_sparse_select_small.1} parent=23 // pred_fallthru
          _
      $region24: #{_sparse_select_small.1} parent=5 // pred_fallthru
        _
      %p178 = scmp.le.s32.totalorder 2, %s10
      // Predicated region
      $region33: #{_sparse_select_small.1} parent=5 // pred_check
        %p179 = pneg %p178
      $region34: #{_sparse_select_small.1} parent=5 // pred_check_branch
        %181 = sbr.rel (%p179) target = $region36
      $region35: #{_sparse_select_small.1} parent=5 // pred_region
        %s182 = ssub.s32 %s10, 2
        // Predicated region
        $region37: #{_sparse_select_small.1} parent=35 // pred_check
          %p183 = pneg %p65
        $region38: #{_sparse_select_small.1} parent=35 // pred_check_branch
          %185 = sbr.rel (%p183) target = $region40
        $region39: #{_sparse_select_small.1} parent=35 // pred_region
          %p186 = scmp.lt.s32.totalorder %s16, 1
          %s187 = scalar_select %p186, %s16, 1
          %s188 = smul.addr %s187, 8
          %s189 = scalar_lea.vmem %s1, %s188
        $region40: #{_sparse_select_small.1} parent=35 // pred_fallthru
          _
      $region36: #{_sparse_select_small.1} parent=5 // pred_fallthru
        _
    $region6: #{_sparse_select_small.1} parent=1 // loop_footer
      %s14 = sadd.s32 1, %s10
    $region7: #{_sparse_select_small.1} parent=1 // loop_footer_branch
      %9 = sbr.rel target = $region3
    $region8: #{_sparse_select_small.1} parent=1 // loop_exit
      _
    %190 = vsyncpa [#allocation3], 1
    %s191 = scalar_lea.sflag [#allocation3], 1
    %192 = vsyncpa %s191, 1

</llo_original>
